<compile_context>
chip_gen: v6e
topology: v6e:2x2x1
jax: 0.10.0
libtpu: 0.0.40
codegen_flags: <defaults>
</compile_context>

<pallas_src>
import functools
import math

import jax
import jax.numpy as jnp
from jax.experimental import pallas as pl
from jax.experimental.pallas import tpu as pltpu

_MB = 1024 * 1024


def make_positional_encoding_table(d_model: int, max_len: int = 512) -> jnp.ndarray:
    """Deterministic buffer init identical to the PyTorch __init__ (plain JAX glue)."""
    position = jnp.arange(0, max_len, dtype=jnp.float32)[:, None]            # (max_len, 1)
    div_term = jnp.exp(
        jnp.arange(0, d_model, 2, dtype=jnp.float32) * (-math.log(10000.0) / d_model)
    )                                                                         # (d_model//2,)
    angles = position * div_term                                              # (max_len, d//2)
    # interleave: even cols = sin, odd cols = cos
    pe = jnp.stack([jnp.sin(angles), jnp.cos(angles)], axis=-1).reshape(max_len, d_model)
    return pe.astype(jnp.float32)                                             # (max_len, d_model)


def _round_up(n: int, m: int) -> int:
    return ((n + m - 1) // m) * m


def _chip_profile():
    """(working-set budget, vmem_limit_bytes, tensorcores-per-chip) by TPU generation."""
    kind = ""
    try:
        kind = (jax.devices()[0].device_kind or "").lower()
    except Exception:  # pragma: no cover - defensive; fall back to safe defaults
        pass
    if "v7" in kind:
        # 64 MiB VMEM per TC, 2 TCs: conservative budget, keep grid steps a multiple of 2.
        return 12 * _MB, 48 * _MB, 2
    if "v6" in kind:
        # 1 TC, 128 MiB physical VMEM: bigger tiles keep us at the HBM roofline.
        return 20 * _MB, 64 * _MB, 1
    if "v5p" in kind or "v4" in kind:
        # Megacore chips: 2 TCs sharing 128 MiB VMEM.
        return 16 * _MB, 48 * _MB, 2
    # v5e / unknown: conservative single-TC defaults.
    return 8 * _MB, 32 * _MB, 1


def _pe_add_kernel(x_ref, pe_ref, o_ref, *, batch: int, d_model: int):
    # x_ref/o_ref : (TS, B*D) lane-dense tiles of the flattened input / output.
    # pe_ref      : (TS, D)   matching rows of the positional table (already x.dtype).
    pe = pe_ref[...]
    if batch == 1:
        o_ref[...] = x_ref[...] + pe
    elif d_model % 128 == 0:
        # 128-aligned static lane slices: B dense per-batch adds, no (TS, B*D) pe temporary.
        for b in range(batch):
            lo = b * d_model
            o_ref[:, lo:lo + d_model] = x_ref[:, lo:lo + d_model] + pe
    else:
        # Narrow d_model: lane slices would be unaligned anyway; materialize the broadcast
        # (counted in the wrapper's VMEM budget). Only hit for D not a multiple of 128.
        o_ref[...] = x_ref[...] + jnp.tile(pe, (1, batch))


def positional_encoding_forward(x: jnp.ndarray, pe: jnp.ndarray, *,
                                donate_x: bool = False) -> jnp.ndarray:
    """x: (S, B, D); pe: (max_len, D). Returns x + pe[:S] broadcast over the batch axis."""
    S, B, D = x.shape
    max_len, d_model = pe.shape
    assert d_model == D and S <= max_len

    bd = B * D
    itemsize = jnp.dtype(x.dtype).itemsize
    budget_bytes, vmem_limit, num_tc = _chip_profile()

    # Per-row working set: double-buffered x + out tiles, double-buffered pe tile,
    # plus (unaligned-D fallback only) one materialized (TS, B*D) pe broadcast.
    per_row = 4 * bd * itemsize + 2 * D * itemsize
    if B > 1 and D % 128 != 0:
        per_row += bd * itemsize

    # --- sequence tile: multiple of 8, <= (S//8)*8 (partial last block is masked) ----
    if S <= 8:
        ts = S  # single block equal to the full (tiny) seq dim
    else:
        s_floor8 = (S // 8) * 8
        ts = max(8, min(1024, (budget_bytes // per_row) // 8 * 8, s_floor8))
        if num_tc > 1 and S >= 16:
            # Balanced megacore sharding: make the step count a multiple of the TC count.
            n_steps = pl.cdiv(S, ts)
            if n_steps % num_tc != 0:
                target = _round_up(max(n_steps, num_tc), num_tc)
                ts = max(8, _round_up(pl.cdiv(S, target), 8))
                ts = min(ts, s_floor8)
    grid = (pl.cdiv(S, ts),)

    # --- lane-dense flatten; pe stays (rows, D) and is never padded/expanded in HBM ---
    x2 = x.reshape(S, bd)
    pe_in = pe[:S] if S < 8 else pe            # full-dim block rule needs first dim == S only when ts == S < 8
    # NOTE: pre-casting pe to x.dtype means bf16 activations get a bf16 add/output,
    # whereas PyTorch type promotion would give f32 (intentional trade-off).
    if pe_in.dtype != x.dtype:
        pe_in = pe_in.astype(x.dtype)

    out2 = pl.pallas_call(
        functools.partial(_pe_add_kernel, batch=B, d_model=D),
        out_shape=jax.ShapeDtypeStruct((S, bd), x.dtype),
        grid_spec=pltpu.PrefetchScalarGridSpec(
            num_scalar_prefetch=0,
            grid=grid,
            in_specs=[
                pl.BlockSpec((ts, bd), lambda i: (i, 0)),   # x tile (lane-dense last dim)
                pl.BlockSpec((ts, D), lambda i: (i, 0)),    # matching pe rows
            ],
            out_specs=pl.BlockSpec((ts, bd), lambda i: (i, 0)),
        ),
        compiler_params=pltpu.CompilerParams(
            dimension_semantics=("parallel",),
            vmem_limit_bytes=vmem_limit,
        ),
        # Reuse x's HBM buffer for the output when the caller donates it.
        input_output_aliases=({0: 0} if donate_x else {}),
    )(x2, pe_in)

    return out2.reshape(S, B, D)


if __name__ == "__main__":
    MAX_LEN = 512

    # Small shapes consistent with the module's forward: (seq, batch, d_model).
    S, B, D = 8, 2, 32
    key = jax.random.PRNGKey(0)
    x = jax.random.normal(key, (S, B, D), dtype=jnp.float32)
    pe = make_positional_encoding_table(D, MAX_LEN)

    out = jax.block_until_ready(positional_encoding_forward(x, pe))
    ref = x + pe[:S][:, None, :]
    assert out.shape == (S, B, D)
    assert jnp.allclose(out, ref, atol=1e-6, rtol=1e-6), "mismatch vs reference (small)"

    # Ragged / multi-tile path: S not a multiple of 8 or of the tile (no wrapper padding).
    S2, B2, D2 = 50, 2, 32
    x_r = jax.random.normal(jax.random.PRNGKey(1), (S2, B2, D2), dtype=jnp.float32)
    out_r = jax.block_until_ready(positional_encoding_forward(x_r, pe))
    ref_r = x_r + pe[:S2][:, None, :]
    assert jnp.allclose(out_r, ref_r, atol=1e-6, rtol=1e-6), "mismatch vs reference (ragged)"

    # 128-aligned d_model path: exercises the per-batch slice adds (no pe broadcast temp).
    S3, B3, D3 = 24, 2, 128
    pe_wide = make_positional_encoding_table(D3, MAX_LEN)
    x_w = jax.random.normal(jax.random.PRNGKey(2), (S3, B3, D3), dtype=jnp.float32)
    out_w = jax.block_until_ready(positional_encoding_forward(x_w, pe_wide))
    ref_w = x_w + pe_wide[:S3][:, None, :]
    assert jnp.allclose(out_w, ref_w, atol=1e-6, rtol=1e-6), "mismatch vs reference (wide)"

    print("KERNEL_OK")
</pallas_src>

<mosaic_0001>
module attributes {stable_mosaic.version = 11 : i64} {
  func.func @_pe_add_kernel(%arg0: i32, %arg1: memref<8x64xf32, #tpu.memory_space<vmem>>, %arg2: memref<8x32xf32, #tpu.memory_space<vmem>>, %arg3: memref<8x64xf32, #tpu.memory_space<vmem>>) attributes {dimension_semantics = [#tpu.dimension_semantics<parallel>], iteration_bounds = array<i64: 1>, scalar_prefetch = 0 : i64, scratch_operands = 0 : i64, tpu.core_type = #tpu.core_type<tc>, window_params = [{transform_indices = @transform_0, window_bounds = array<i64: 8, 64>}, {transform_indices = @transform_1, window_bounds = array<i64: 8, 32>}, {transform_indices = @transform_2, window_bounds = array<i64: 8, 64>}]} {
    %c0 = arith.constant 0 : index
    %c0_0 = arith.constant 0 : index
    %0 = vector.load %arg2[%c0, %c0_0] : memref<8x32xf32, #tpu.memory_space<vmem>>, vector<8x32xf32>
    %c0_1 = arith.constant 0 : index
    %c0_2 = arith.constant 0 : index
    %1 = vector.load %arg1[%c0_1, %c0_2] : memref<8x64xf32, #tpu.memory_space<vmem>>, vector<8x64xf32>
    %2 = tpu.concatenate %0, %0 in 1 : vector<8x32xf32>, vector<8x32xf32> -> vector<8x64xf32>
    %3 = arith.addf %1, %2 : vector<8x64xf32>
    %c0_3 = arith.constant 0 : index
    %c0_4 = arith.constant 0 : index
    %4 = vector.load %arg3[%c0_3, %c0_4] : memref<8x64xf32, #tpu.memory_space<vmem>>, vector<8x64xf32>
    tpu.vector_store %arg3[%c0_3, %c0_4], %3 {strides = array<i32>} : memref<8x64xf32, #tpu.memory_space<vmem>>, vector<8x64xf32>,
    return
  }
  func.func @transform_0(%arg0: i32) -> (i32, i32) {
    %c0_i32 = arith.constant 0 : i32
    %c0_i32_0 = arith.constant 0 : i32
    return %arg0, %c0_i32 : i32, i32
  }
  func.func @transform_1(%arg0: i32) -> (i32, i32) {
    %c0_i32 = arith.constant 0 : i32
    %c0_i32_0 = arith.constant 0 : i32
    return %arg0, %c0_i32 : i32, i32
  }
  func.func @transform_2(%arg0: i32) -> (i32, i32) {
    %c0_i32 = arith.constant 0 : i32
    %c0_i32_0 = arith.constant 0 : i32
    return %arg0, %c0_i32 : i32, i32
  }
}

</mosaic_0001>

<llo_original>
// kernel: tpu_custom_call.1
$region0: #{tpu_custom_call.1}
  #allocation0 [shape = 'u32[]', space=smem, size = 0x4, offset = 0x4, fixed_abs, tag = 'smem constant byte address 0x4 - core index']
  #allocation1 [shape = 'u32[144,128]{1,0:T(1,128)}', space=vmem, size = 0x12000, scoped, tag = 'internal scratch']
  %s0 = inlined_call_operand.vmem [shape: f32[8,64], index: 0, kind: input, shape index: {}]
  %s1 = inlined_call_operand.vmem [shape: f32[512,32], index: 1, kind: input, shape index: {}]
  %s2 = inlined_call_operand.hbm [shape: f32[8,64], index: 2, kind: output, shape index: {}]
  %s3 = sld [smem:[#allocation0]]
  $region18: #{tpu_custom_call.1} parent=0
    _
  %s5 = ssub.s32 1, %s3
  %s6 = scalar_select 0, %s5, %s3
  $region1: #{tpu_custom_call.1} parent=0
    #allocation2 [shape = 'u8[4096]{0}', space=vmem, size = 0x1000, scoped, tag = 'output window, operand 0, single buffered']
    #allocation3 [shape = 's32[1]{0}', space=sflag, size = 0x4, scoped, tag = 'scoped memory for tpu_custom_call.1']
    %7 = vsyncpa [#allocation3], 0
    // Predicated region
    $region2: #{tpu_custom_call.1} parent=1 // pred_check
      _
    $region3: #{tpu_custom_call.1} parent=1 // pred_check_branch
      %9 = sbr.rel (0) target = $region5
    $region4: #{tpu_custom_call.1} parent=1 // pred_region
      _
    $region5: #{tpu_custom_call.1} parent=1 // pred_fallthru
      _
    // Predicated region
    $region6: #{tpu_custom_call.1} parent=1 // pred_check
      _
    $region7: #{tpu_custom_call.1} parent=1 // pred_check_branch
      %11 = sbr.rel (0) target = $region9
    $region8: #{tpu_custom_call.1} parent=1 // pred_region
      _
    $region9: #{tpu_custom_call.1} parent=1 // pred_fallthru
      _
    %v12 = vld [vmem:[%s1] sm:$0xff]
    %v13 = vld [vmem:[%s0] sm:$0xff]
    %15 = vrot.lane.b32.xlu0 %v12, 32
    %v16 = vpop.permute.xlu0 %15
    %vm18 = vcmask 261120
    %v19 = vsel %vm18, %v12, %v16
    %v20 = vadd.f32 %v13, %v19
    %vm21 = vcmask 523264
    %22 = vst.msk [vmem:[#allocation2] sm:$0xff] %vm21, %v20
    // Predicated region
    $region10: #{tpu_custom_call.1} parent=1 // pred_check
      _
    $region11: #{tpu_custom_call.1} parent=1 // pred_check_branch
      %24 = sbr.rel (0) target = $region13
    $region12: #{tpu_custom_call.1} parent=1 // pred_region
      %s26 = ssub.s32 128, 128
      %27 = vsyncadd [#allocation3], %s26
      %s29 = sshll.u32 [#allocation2], 4
      %s30 = int_to_ptr.vmem [resolvable:$true] %s29
      %32 = dma.vmem_to_hbm [thread:$0]  %s30, 128, %s2, [#allocation3]
    $region13: #{tpu_custom_call.1} parent=1 // pred_fallthru
      _
    // Predicated region
    $region14: #{tpu_custom_call.1} parent=1 // pred_check
      _
    $region15: #{tpu_custom_call.1} parent=1 // pred_check_branch
      %34 = sbr.rel (0) target = $region17
    $region16: #{tpu_custom_call.1} parent=1 // pred_region
      %35 = dma.done [#allocation3], 128
    $region17: #{tpu_custom_call.1} parent=1 // pred_fallthru
      _
    %36 = vsyncpa [#allocation3], 1

</llo_original>
